<compile_context>
chip_gen: v7x
topology: tpu7x:2x2x1
jax: 0.10.0
libtpu: 0.0.40
codegen_flags: <defaults>
</compile_context>

<pallas_src>
import math

import jax
import jax.numpy as jnp
from jax.experimental import pallas as pl
from jax.experimental.pallas import tpu as pltpu


# ----------------------------------------------------------------------------
# Kernels
# ----------------------------------------------------------------------------

def _freq_kernel_halfsplit(t_ref, freq_ref, out_ref):
    """half_dim % 128 == 0: half-width compute, two lane-aligned half stores."""
    # t_ref: (TILE_B, 1) f32, freq_ref: (1, half_dim) f32, out_ref: (TILE_B, dim)
    half = freq_ref.shape[1]
    emb = t_ref[...] * freq_ref[...]                      # (TILE_B, half_dim)
    out_ref[:, :half] = jnp.sin(emb).astype(out_ref.dtype)   # unmasked vst
    out_ref[:, half:] = jnp.cos(emb).astype(out_ref.dtype)   # unmasked vst


def _freq_kernel_select(t_ref, tab_ref, out_ref):
    """Fallback for unaligned dims: full-width emb with sin/cos selector row."""
    # tab_ref: (2, dim) -> row 0 = [freqs, freqs], row 1 = selector (1 sin / 0 cos)
    freq = tab_ref[0:1, :]
    sel = tab_ref[1:2, :]
    emb = t_ref[...] * freq                                # (TILE_B, dim)
    out = jnp.where(sel > 0.5, jnp.sin(emb), jnp.cos(emb))
    out_ref[...] = out.astype(out_ref.dtype)


def _make_packed_kernel(k):
    """dim < 128 (128 % dim == 0): pack k batch rows into one 128-lane output row."""
    def kernel(t_ref, tab_ref, out_ref):
        # t_ref:   (TILE_R, k)     k timesteps per packed row
        # tab_ref: (k + 1, 128)    rows 0..k-1: freq_full placed in lane-group j,
        #                          zero elsewhere; row k: sin/cos selector
        # out_ref: (TILE_R, 128)   lane-dense output tile
        t = t_ref[...]
        emb = t[:, 0:1] * tab_ref[0:1, :]
        for j in range(1, k):                              # k small (<= 32), unrolled
            emb = emb + t[:, j:j + 1] * tab_ref[j:j + 1, :]
        sel = tab_ref[k:k + 1, :]
        out = jnp.where(sel > 0.5, jnp.sin(emb), jnp.cos(emb))
        out_ref[...] = out.astype(out_ref.dtype)
    return kernel


# ----------------------------------------------------------------------------
# Tiling helpers
# ----------------------------------------------------------------------------

def _round_up(x, m):
    return ((x + m - 1) // m) * m


# ~4 MiB of f32 output per grid step: big enough to amortize the ~0.35 us/step grid
# overhead, and double-buffered (~8 MiB) it fits every generation's default scoped
# VMEM (v5e 16 MiB, v6e/v7x 32 MiB) without touching vmem_limit_bytes.
_TARGET_TILE_BYTES = 4 * 1024 * 1024


def _pick_tile_rows(rows, row_bytes, tile_rows=None):
    """Choose (tile_rows, padded_rows) for the batch grid axis."""
    if tile_rows is None:
        tile_rows = max(512, _TARGET_TILE_BYTES // max(row_bytes, 1))
    tile_rows = _round_up(tile_rows, 8)
    if rows >= 64:
        # Ensure >= 2 grid steps so the "parallel" batch axis can shard across
        # v7x's two TensorCores (no effect on single-TC v5e/v6e).
        tile_rows = min(tile_rows, _round_up(pl.cdiv(rows, 2), 8))
    if rows <= tile_rows:
        return rows, rows                      # single full-extent block, no padding
    rows_pad = _round_up(rows, tile_rows)
    return tile_rows, rows_pad


# ----------------------------------------------------------------------------
# Public wrapper
# ----------------------------------------------------------------------------

def frequency_encoding(t: jax.Array, dim: int, *,
                       out_dtype=jnp.float32, tile_rows: int | None = None) -> jax.Array:
    """JAX/Pallas equivalent of FrequencyEncoding(dim).forward(t)."""
    assert t.ndim == 1, "t is expected to be a 1-D batch of timesteps"
    assert dim % 2 == 0, "dim must be even (PyTorch module silently truncates odd dim)"
    half_dim = dim // 2
    assert half_dim > 1, "dim must be >= 4 (half_dim == 1 divides by zero in emb_scale)"

    emb_scale = math.log(10000.0) / (half_dim - 1)
    # Parameter-free setup (torch.exp(arange * -emb_scale)), computed once host-side;
    # it is DMA'd once and stays resident across all grid steps.
    freqs = jnp.exp(jnp.arange(half_dim, dtype=jnp.float32) * -emb_scale)

    b = t.shape[0]
    t_f32 = t.astype(jnp.float32)
    compiler_params = pltpu.CompilerParams(dimension_semantics=("parallel",))

    # ---- Path B: dim < 128 -> lane-pack k batch rows per 128-lane output row ----
    if dim < 128 and 128 % dim == 0:
        k = 128 // dim
        width = k * dim                                     # == 128, lane dense
        rows = pl.cdiv(b, k)
        tile_r, rows_pad = _pick_tile_rows(rows, width * 4, tile_rows)
        b_pack = rows_pad * k
        if b_pack != b:
            t_f32 = jnp.pad(t_f32, (0, b_pack - b))
        t2d = t_f32.reshape(rows_pad, k)

        freq_full = jnp.concatenate([freqs, freqs])          # (dim,)
        # Row j carries freq_full inside lane-group j, zero elsewhere; last row is the
        # sin/cos selector.  All constants merged into one resident (k+1, 128) input.
        freq_rows = jnp.kron(jnp.eye(k, dtype=jnp.float32), freq_full[None, :])
        sel = jnp.tile(jnp.concatenate([jnp.ones((half_dim,), jnp.float32),
                                        jnp.zeros((half_dim,), jnp.float32)]), k)
        table = jnp.concatenate([freq_rows, sel[None, :]], axis=0)   # (k+1, 128)

        out = pl.pallas_call(
            _make_packed_kernel(k),
            out_shape=jax.ShapeDtypeStruct((rows_pad, width), out_dtype),
            grid=(rows_pad // tile_r,),
            in_specs=[
                pl.BlockSpec((tile_r, k), lambda i: (i, 0)),        # packed timesteps
                pl.BlockSpec((k + 1, width), lambda i: (0, 0)),     # resident table
            ],
            out_specs=pl.BlockSpec((tile_r, width), lambda i: (i, 0)),
            compiler_params=compiler_params,
        )(t2d, table)
        # Row-major-compatible reshape back to (rows*k, dim), drop padding rows.
        return out.reshape(rows_pad * k, dim)[:b]

    # ---- Paths A / C: one batch row per output row -------------------------------
    tile_b, b_pad = _pick_tile_rows(b, dim * 4, tile_rows)
    t2d = t_f32.reshape(b, 1)
    if b_pad != b:
        t2d = jnp.pad(t2d, ((0, b_pad - b), (0, 0)))
    grid = (b_pad // tile_b,)

    if half_dim % 128 == 0:
        # Path A: half-width compute, two lane-aligned unmasked half stores.
        freq_row = freqs.reshape(1, half_dim)
        out = pl.pallas_call(
            _freq_kernel_halfsplit,
            out_shape=jax.ShapeDtypeStruct((b_pad, dim), out_dtype),
            grid=grid,
            in_specs=[
                pl.BlockSpec((tile_b, 1), lambda i: (i, 0)),         # per-tile timesteps
                pl.BlockSpec((1, half_dim), lambda i: (0, 0)),       # resident freq row
            ],
            out_specs=pl.BlockSpec((tile_b, dim), lambda i: (i, 0)),
            compiler_params=compiler_params,
        )(t2d, freq_row)
    else:
        # Path C: fallback selector (full-width compute), unaligned dims only.
        freq_full = jnp.concatenate([freqs, freqs]).reshape(1, dim)
        sel = jnp.concatenate([jnp.ones((half_dim,), jnp.float32),
                               jnp.zeros((half_dim,), jnp.float32)]).reshape(1, dim)
        table = jnp.concatenate([freq_full, sel], axis=0)            # (2, dim)
        out = pl.pallas_call(
            _freq_kernel_select,
            out_shape=jax.ShapeDtypeStruct((b_pad, dim), out_dtype),
            grid=grid,
            in_specs=[
                pl.BlockSpec((tile_b, 1), lambda i: (i, 0)),
                pl.BlockSpec((2, dim), lambda i: (0, 0)),            # resident freq+sel
            ],
            out_specs=pl.BlockSpec((tile_b, dim), lambda i: (i, 0)),
            compiler_params=compiler_params,
        )(t2d, table)

    if b_pad != b:
        out = out[:b]
    return out


# ----------------------------------------------------------------------------
# Reference + tests
# ----------------------------------------------------------------------------

def _reference(t: jax.Array, dim: int) -> jax.Array:
    half_dim = dim // 2
    emb_scale = math.log(10000.0) / (half_dim - 1)
    freqs = jnp.exp(jnp.arange(half_dim, dtype=jnp.float32) * -emb_scale)
    emb = t.astype(jnp.float32)[:, None] * freqs[None, :]
    return jnp.concatenate([jnp.sin(emb), jnp.cos(emb)], axis=-1)


if __name__ == "__main__":
    key = jax.random.PRNGKey(0)

    # --- Path B (lane-packed, dim < 128), single-block: the module's typical test. ---
    batch, dim = 8, 32
    t = jax.random.uniform(key, (batch,), dtype=jnp.float32, minval=0.0, maxval=1000.0)
    out = jax.block_until_ready(frequency_encoding(t, dim))
    assert out.shape == (batch, dim)
    assert jnp.allclose(out, _reference(t, dim), atol=1e-5, rtol=1e-5)

    # --- Path B multi-tile: exercises grid > 1, batch padding, parallel axis. ---
    batch2 = 300
    t2 = jax.random.uniform(jax.random.PRNGKey(0), (batch2,), dtype=jnp.float32,
                            minval=0.0, maxval=1000.0)
    out2 = jax.block_until_ready(frequency_encoding(t2, dim))     # rows=75 -> grid=(2,)
    assert out2.shape == (batch2, dim)
    assert jnp.allclose(out2, _reference(t2, dim), atol=1e-5, rtol=1e-5)

    # --- Path A (half-width split, half_dim % 128 == 0), 2 grid steps. ---
    batch3, dim3 = 64, 256
    t3 = jax.random.uniform(jax.random.PRNGKey(0), (batch3,), dtype=jnp.float32,
                            minval=0.0, maxval=1000.0)
    out3 = jax.block_until_ready(frequency_encoding(t3, dim3))
    assert out3.shape == (batch3, dim3)
    assert jnp.allclose(out3, _reference(t3, dim3), atol=1e-5, rtol=1e-5)

    # --- Path C (selector fallback, unaligned dim). ---
    batch4, dim4 = 20, 192
    t4 = jax.random.uniform(jax.random.PRNGKey(0), (batch4,), dtype=jnp.float32,
                            minval=0.0, maxval=1000.0)
    out4 = jax.block_until_ready(frequency_encoding(t4, dim4))
    assert out4.shape == (batch4, dim4)
    assert jnp.allclose(out4, _reference(t4, dim4), atol=1e-5, rtol=1e-5)

    print("KERNEL_OK")
</pallas_src>

<mosaic_0001>
module attributes {stable_mosaic.version = 11 : i64} {
  func.func @kernel(%arg0: i32, %arg1: memref<2x4xf32, #tpu.memory_space<vmem>>, %arg2: memref<5x128xf32, #tpu.memory_space<vmem>>, %arg3: memref<2x128xf32, #tpu.memory_space<vmem>>) attributes {dimension_semantics = [#tpu.dimension_semantics<parallel>], iteration_bounds = array<i64: 1>, scalar_prefetch = 0 : i64, scratch_operands = 0 : i64, tpu.core_type = #tpu.core_type<tc>, window_params = [{transform_indices = @transform_0, window_bounds = array<i64: 2, 4>}, {pipeline_mode = #tpu.pipeline_mode<synchronous>, transform_indices = @transform_1, window_bounds = array<i64: 5, 128>}, {transform_indices = @transform_2, window_bounds = array<i64: 2, 128>}]} {
    %c0 = arith.constant 0 : index
    %c0_0 = arith.constant 0 : index
    %0 = vector.load %arg1[%c0, %c0_0] : memref<2x4xf32, #tpu.memory_space<vmem>>, vector<2x4xf32>
    %1 = vector.extract_strided_slice %0 {offsets = [0, 0], sizes = [2, 1], strides = [1, 1]} : vector<2x4xf32> to vector<2x1xf32>
    %c0_1 = arith.constant 0 : index
    %c0_2 = arith.constant 0 : index
    %2 = vector.load %arg2[%c0_1, %c0_2] : memref<5x128xf32, #tpu.memory_space<vmem>>, vector<1x128xf32>
    %3 = vector.broadcast %1 : vector<2x1xf32> to vector<2x128xf32>
    %4 = vector.broadcast %2 : vector<1x128xf32> to vector<2x128xf32>
    %5 = arith.mulf %3, %4 : vector<2x128xf32>
    %6 = vector.extract_strided_slice %0 {offsets = [0, 1], sizes = [2, 1], strides = [1, 1]} : vector<2x4xf32> to vector<2x1xf32>
    %c1 = arith.constant 1 : index
    %c0_3 = arith.constant 0 : index
    %7 = vector.load %arg2[%c1, %c0_3] : memref<5x128xf32, #tpu.memory_space<vmem>>, vector<1x128xf32>
    %8 = vector.broadcast %6 : vector<2x1xf32> to vector<2x128xf32>
    %9 = vector.broadcast %7 : vector<1x128xf32> to vector<2x128xf32>
    %10 = arith.mulf %8, %9 : vector<2x128xf32>
    %11 = arith.addf %5, %10 : vector<2x128xf32>
    %12 = vector.extract_strided_slice %0 {offsets = [0, 2], sizes = [2, 1], strides = [1, 1]} : vector<2x4xf32> to vector<2x1xf32>
    %c2 = arith.constant 2 : index
    %c0_4 = arith.constant 0 : index
    %13 = vector.load %arg2[%c2, %c0_4] : memref<5x128xf32, #tpu.memory_space<vmem>>, vector<1x128xf32>
    %14 = vector.broadcast %12 : vector<2x1xf32> to vector<2x128xf32>
    %15 = vector.broadcast %13 : vector<1x128xf32> to vector<2x128xf32>
    %16 = arith.mulf %14, %15 : vector<2x128xf32>
    %17 = arith.addf %11, %16 : vector<2x128xf32>
    %18 = vector.extract_strided_slice %0 {offsets = [0, 3], sizes = [2, 1], strides = [1, 1]} : vector<2x4xf32> to vector<2x1xf32>
    %c3 = arith.constant 3 : index
    %c0_5 = arith.constant 0 : index
    %19 = vector.load %arg2[%c3, %c0_5] : memref<5x128xf32, #tpu.memory_space<vmem>>, vector<1x128xf32>
    %20 = vector.broadcast %18 : vector<2x1xf32> to vector<2x128xf32>
    %21 = vector.broadcast %19 : vector<1x128xf32> to vector<2x128xf32>
    %22 = arith.mulf %20, %21 : vector<2x128xf32>
    %23 = arith.addf %17, %22 : vector<2x128xf32>
    %c4 = arith.constant 4 : index
    %c0_6 = arith.constant 0 : index
    %24 = vector.load %arg2[%c4, %c0_6] : memref<5x128xf32, #tpu.memory_space<vmem>>, vector<1x128xf32>
    %cst = arith.constant 5.000000e-01 : f32
    %25 = vector.broadcast %cst : f32 to vector<1x128xf32>
    %26 = arith.cmpf ogt, %24, %25 : vector<1x128xf32>
    %27 = math.sin %23 : vector<2x128xf32>
    %28 = math.cos %23 : vector<2x128xf32>
    %29 = vector.shape_cast %26 : vector<1x128xi1> to vector<1x128xi1>
    %30 = vector.broadcast %29 : vector<1x128xi1> to vector<2x128xi1>
    %31 = arith.select %30, %27, %28 : vector<2x128xi1>, vector<2x128xf32>
    %c0_7 = arith.constant 0 : index
    %c0_8 = arith.constant 0 : index
    %32 = vector.load %arg3[%c0_7, %c0_8] : memref<2x128xf32, #tpu.memory_space<vmem>>, vector<2x128xf32>
    tpu.vector_store %arg3[%c0_7, %c0_8], %31 {strides = array<i32>} : memref<2x128xf32, #tpu.memory_space<vmem>>, vector<2x128xf32>,
    return
  }
  func.func @transform_0(%arg0: i32) -> (i32, i32) {
    %c0_i32 = arith.constant 0 : i32
    %c0_i32_0 = arith.constant 0 : i32
    return %arg0, %c0_i32 : i32, i32
  }
  func.func @transform_1(%arg0: i32) -> (i32, i32) {
    %c0_i32 = arith.constant 0 : i32
    %c0_i32_0 = arith.constant 0 : i32
    %c0_i32_1 = arith.constant 0 : i32
    return %c0_i32, %c0_i32_0 : i32, i32
  }
  func.func @transform_2(%arg0: i32) -> (i32, i32) {
    %c0_i32 = arith.constant 0 : i32
    %c0_i32_0 = arith.constant 0 : i32
    return %arg0, %c0_i32 : i32, i32
  }
}

</mosaic_0001>

<llo_original>
// kernel: tpu_custom_call.1
$region0: #{tpu_custom_call.1}
  #allocation0 [shape = 'u32[]', space=smem, size = 0x4, offset = 0x4, fixed_abs, tag = 'smem constant byte address 0x4 - core index']
  #allocation1 [shape = 'u32[144,128]{1,0:T(1,128)}', space=vmem, size = 0x12000, scoped, tag = 'internal scratch']
  %s0 = inlined_call_operand.hbm [shape: f32[2,4], index: 0, kind: input, shape index: {}]
  %s1 = inlined_call_operand.hbm [shape: f32[5,128], index: 1, kind: input, shape index: {}]
  %s2 = inlined_call_operand.hbm [shape: f32[2,128], index: 2, kind: output, shape index: {}]
  %s3 = sld [smem:[#allocation0]]
  $region26: #{tpu_custom_call.1} parent=0
    _
  %s5 = ssub.s32 1, %s3
  %s6 = scalar_select 0, %s5, %s3
  $region1: #{tpu_custom_call.1} parent=0
    #allocation2 [shape = 'u8[1024]{0}', space=vmem, size = 0x400, scoped, tag = 'input window, operand 0, single buffered']
    #allocation3 [shape = 's32[1]{0}', space=sflag, size = 0x4, scoped, tag = 'scoped memory for tpu_custom_call.1']
    #allocation4 [shape = 's32[1]{0}', space=sflag, size = 0x4, scoped, tag = 'scoped memory for tpu_custom_call.1']
    #allocation5 [shape = 'u8[4096]{0}', space=vmem, size = 0x1000, scoped, tag = 'input window, operand 1, single buffered']
    #allocation6 [shape = 's32[1]{0}', space=sflag, size = 0x4, scoped, tag = 'scoped memory for tpu_custom_call.1']
    #allocation7 [shape = 'u8[1024]{0}', space=vmem, size = 0x400, scoped, tag = 'output window, operand 0, single buffered']
    %7 = vsyncpa [#allocation3], 0
    %8 = vsyncpa [#allocation6], 0
    %9 = vsyncpa [#allocation4], 0
    // Predicated region
    $region2: #{tpu_custom_call.1} parent=1 // pred_check
      _
    $region3: #{tpu_custom_call.1} parent=1 // pred_check_branch
      %11 = sbr.rel (0) target = $region5
    $region4: #{tpu_custom_call.1} parent=1 // pred_region
      %s13 = ssub.s32 32, 32
      %14 = vsyncadd [#allocation3], %s13
      %s16 = sshll.u32 [#allocation2], 4
      %s17 = int_to_ptr.vmem [resolvable:$true] %s16
      %19 = dma.hbm_to_vmem [thread:$0]  %s0, 32, %s17, [#allocation3]
    $region5: #{tpu_custom_call.1} parent=1 // pred_fallthru
      _
    // Predicated region
    $region6: #{tpu_custom_call.1} parent=1 // pred_check
      _
    $region7: #{tpu_custom_call.1} parent=1 // pred_check_branch
      %21 = sbr.rel (0) target = $region9
    $region8: #{tpu_custom_call.1} parent=1 // pred_region
      %s23 = ssub.s32 128, 128
      %24 = vsyncadd [#allocation6], %s23
      %s26 = sshll.u32 [#allocation5], 4
      %s27 = int_to_ptr.vmem [resolvable:$true] %s26
      %29 = dma.hbm_to_vmem [thread:$0]  %s1, 128, %s27, [#allocation6]
    $region9: #{tpu_custom_call.1} parent=1 // pred_fallthru
      _
    // Predicated region
    $region10: #{tpu_custom_call.1} parent=1 // pred_check
      _
    $region11: #{tpu_custom_call.1} parent=1 // pred_check_branch
      %31 = sbr.rel (0) target = $region13
    $region12: #{tpu_custom_call.1} parent=1 // pred_region
      %32 = dma.done [#allocation3], 32
    $region13: #{tpu_custom_call.1} parent=1 // pred_fallthru
      _
    // Predicated region
    $region14: #{tpu_custom_call.1} parent=1 // pred_check
      _
    $region15: #{tpu_custom_call.1} parent=1 // pred_check_branch
      %34 = sbr.rel (0) target = $region17
    $region16: #{tpu_custom_call.1} parent=1 // pred_region
      %35 = dma.done [#allocation6], 128
    $region17: #{tpu_custom_call.1} parent=1 // pred_fallthru
      _
    %v36 = vld [vmem:[#allocation2] sm:$0x3]
    %v37 = vld [vmem:[#allocation5] sm:$0x1]
    %39 = vset.pattern.permute.xlu0 0
    %40 = vperm.xlu0 %39, %v36
    %v41 = vpop.permute.xlu0 %40
    %v43 = vlaneseq
    %v44 = vshrl.u32 %v43, 7
    %v45 = vsub.s32 0, %v44
    %v46 = vrot.slane %v37, %v45
    %v47 = vmul.f32 %v41, %v46
    %v48 = vld [vmem:[#allocation5 + $0x1] sm:$0x1]
    %49 = vset.pattern.permute.xlu0 1
    %50 = vperm.xlu0 %49, %v36
    %v51 = vpop.permute.xlu0 %50
    %v53 = vlaneseq
    %v54 = vshrl.u32 %v53, 7
    %v55 = vsub.s32 0, %v54
    %v56 = vrot.slane %v48, %v55
    %v57 = vmul.f32 %v51, %v56
    %v58 = vadd.f32 %v47, %v57
    %v59 = vld [vmem:[#allocation5 + $0x2] sm:$0x1]
    %60 = vset.pattern.permute.xlu0 2
    %61 = vperm.xlu0 %60, %v36
    %v62 = vpop.permute.xlu0 %61
    %v64 = vlaneseq
    %v65 = vshrl.u32 %v64, 7
    %v66 = vsub.s32 0, %v65
    %v67 = vrot.slane %v59, %v66
    %v68 = vmul.f32 %v62, %v67
    %v69 = vadd.f32 %v58, %v68
    %v70 = vld [vmem:[#allocation5 + $0x3] sm:$0x1]
    %71 = vset.pattern.permute.xlu0 3
    %72 = vperm.xlu0 %71, %v36
    %v73 = vpop.permute.xlu0 %72
    %v75 = vlaneseq
    %v76 = vshrl.u32 %v75, 7
    %v77 = vsub.s32 0, %v76
    %v78 = vrot.slane %v70, %v77
    %v79 = vmul.f32 %v73, %v78
    %v80 = vadd.f32 %v69, %v79
    %v81 = vld [vmem:[#allocation5 + $0x4] sm:$0x1]
    %vm82 = vcmp.gt.f32.partialorder %v81, 0.5
    %v83 = vand.u32 2147483647, %v80
    %vm84 = vcmp.le.f32.partialorder %v83, 0.7853982
    %vm85 = vcmp.lt.s32.totalorder %v80, 0
    %v86 = vand.u32 %v80, 2139095040
    %v87 = vshrl.u32 %v86, 23
    %v88 = vsub.s32 %v87, 127
    %v89 = vand.u32 2147483647, %v80
    %v90 = vand.u32 %v89, 8388607
    %v91 = vor.u32 %v90, 8388608
    %v92 = vsub.s32 0, %v91
    %v93 = vadd.s32 %v88, 1
    %vm94 = vcmp.gt.s32.totalorder %v93, 0
    %v95 = vsel %vm94, %v93, 0
    %v96 = vshrl.u32 %v95, 5
    %v97 = vand.u32 %v95, 31
    %v98 = vsub.s32 32, %v97
    %v99 = vshrl.u32 683565275, %v98
    %v100 = vshll.u32 683565275, %v97
    %v101 = vshrl.u32 2475754826, %v98
    %v102 = vor.u32 %v100, %v101
    %v103 = vshll.u32 2475754826, %v97
    %v104 = vshrl.u32 2131351028, %v98
    %v105 = vor.u32 %v103, %v104
    %v106 = vshll.u32 2131351028, %v97
    %v107 = vshrl.u32 2102212464, %v98
    %v108 = vor.u32 %v106, %v107
    %v109 = vshll.u32 2102212464, %v97
    %v110 = vshrl.u32 920167782, %v98
    %v111 = vor.u32 %v109, %v110
    %v112 = vshll.u32 920167782, %v97
    %v113 = vshrl.u32 1326507024, %v98
    %v114 = vor.u32 %v112, %v113
    %vm115 = vcmp.lt.s32.totalorder %v96, 1
    %vm116 = vcmp.lt.s32.totalorder %v96, 2
    %vm117 = vcmp.lt.s32.totalorder %v96, 3
    %vm118 = vcmp.lt.s32.totalorder %v96, 4
    %v119 = vsel %vm115, %v99, %v102
    %v120 = vsel %vm118, %v108, 2102212464
    %v121 = vsel %vm117, %v105, %v120
    %v122 = vsel %vm116, %v119, %v121
    %v123 = vsel %vm115, %v102, %v105
    %v124 = vsel %vm118, %v111, 920167782
    %v125 = vsel %vm117, %v108, %v124
    %v126 = vsel %vm116, %v123, %v125
    %v127 = vsel %vm115, %v105, %v108
    %v128 = vsel %vm118, %v114, 1326507024
    %v129 = vsel %vm117, %v111, %v128
    %v130 = vsel %vm116, %v127, %v129
    %v131 = vshll.u32 %v91, 8
    %v132 = vmul.u32.u64.compose %v131, %v130
    %v133 = vextract.low.u32 %v132
    %v134 = vextract.high.u32 %v132
    %v135 = vmul.u32.u64.compose %v131, %v126
    %v136 = vextract.low.u32 %v135
    %v137 = vextract.high.u32 %v135
    %v138 = vmul.u32 %v131, %v122
    %v139 = vadd.s32 %v134, %v136
    %vm140 = vc.u32 %v134, %v136
    %v141 = vadd.s32 %v137, 1
    %v142 = vsel %vm140, %v141, %v137
    %v143 = vadd.s32 %v138, %v142
    %v144 = vadd.s32 %v143, 536870912
    %v145 = vshrl.u32 %v144, 30
    %v146 = vshll.u32 %v145, 30
    %v147 = vsub.s32 %v143, %v146
    %vm148 = vcmp.lt.s32.totalorder %v147, 0
    %v149 = vsub.s32 0, %v147
    %v150 = vsel %vm148, %v149, %v147
    %v151 = vclz %v150
    %v152 = vsub.s32 %v151, 2
    %vm153 = vcmp.gt.s32.totalorder 0, %v152
    %v154 = vsel %vm153, 0, %v152
    %v155 = vsub.s32 32, %v154
    %v156 = vshll.u32 %v147, %v154
    %v157 = vshrl.u32 %v139, %v155
    %v158 = vor.u32 %v156, %v157
    %v159 = vsub.s32 4294967266, %v154
    %v160 = vadd.s32 %v159, 127
    %v161 = vshll.u32 %v160, 23
    %v162 = vor.u32 4788187, %v161
    %v163 = vand.u32 2147483647, %v162
    %v165 = vcvt.s32.f32 %v158
    %v166 = vmul.f32 %v165, %v163
    %v167 = vxor.u32 %v166, 2147483648
    %v168 = vsel %vm85, %v167, %v166
    %v169 = vsub.s32 4, %v145
    %v170 = vsel %vm85, %v169, %v145
    %v171 = vsel %vm84, %v80, %v168
    %v172 = vsel %vm84, 0, %v170
    %v173 = vcosq.f32.pop %v171
    %v174 = vsinq.f32.pop %v171
    %vm175 = vweird.f32 %v80
    %v176 = vadd.s32 %v172, 3
    %v177 = vand.u32 %v176, 3
    %vm178 = vcmp.lt.s32.totalorder %v177, 2
    %vm179 = vcmp.eq.s32.totalorder %v177, 0
    %v180 = vxor.u32 %v174, 2147483648
    %v181 = vsel %vm179, %v173, %v180
    %vm182 = vcmp.eq.s32.totalorder %v177, 2
    %v183 = vxor.u32 %v173, 2147483648
    %v184 = vsel %vm182, %v183, %v174
    %v185 = vsel %vm178, %v181, %v184
    %v186 = vsel %vm175, nan, %v185
    %v187 = vand.u32 2147483647, %v80
    %vm188 = vcmp.le.f32.partialorder %v187, 0.7853982
    %vm189 = vcmp.lt.s32.totalorder %v80, 0
    %v190 = vand.u32 %v80, 2139095040
    %v191 = vshrl.u32 %v190, 23
    %v192 = vsub.s32 %v191, 127
    %v193 = vand.u32 2147483647, %v80
    %v194 = vand.u32 %v193, 8388607
    %v195 = vor.u32 %v194, 8388608
    %v196 = vsub.s32 0, %v195
    %v197 = vadd.s32 %v192, 1
    %vm198 = vcmp.gt.s32.totalorder %v197, 0
    %v199 = vsel %vm198, %v197, 0
    %v200 = vshrl.u32 %v199, 5
    %v201 = vand.u32 %v199, 31
    %v202 = vsub.s32 32, %v201
    %v203 = vshrl.u32 683565275, %v202
    %v204 = vshll.u32 683565275, %v201
    %v205 = vshrl.u32 2475754826, %v202
    %v206 = vor.u32 %v204, %v205
    %v207 = vshll.u32 2475754826, %v201
    %v208 = vshrl.u32 2131351028, %v202
    %v209 = vor.u32 %v207, %v208
    %v210 = vshll.u32 2131351028, %v201
    %v211 = vshrl.u32 2102212464, %v202
    %v212 = vor.u32 %v210, %v211
    %v213 = vshll.u32 2102212464, %v201
    %v214 = vshrl.u32 920167782, %v202
    %v215 = vor.u32 %v213, %v214
    %v216 = vshll.u32 920167782, %v201
    %v217 = vshrl.u32 1326507024, %v202
    %v218 = vor.u32 %v216, %v217
    %vm219 = vcmp.lt.s32.totalorder %v200, 1
    %vm220 = vcmp.lt.s32.totalorder %v200, 2
    %vm221 = vcmp.lt.s32.totalorder %v200, 3
    %vm222 = vcmp.lt.s32.totalorder %v200, 4
    %v223 = vsel %vm219, %v203, %v206
    %v224 = vsel %vm222, %v212, 2102212464
    %v225 = vsel %vm221, %v209, %v224
    %v226 = vsel %vm220, %v223, %v225
    %v227 = vsel %vm219, %v206, %v209
    %v228 = vsel %vm222, %v215, 920167782
    %v229 = vsel %vm221, %v212, %v228
    %v230 = vsel %vm220, %v227, %v229
    %v231 = vsel %vm219, %v209, %v212
    %v232 = vsel %vm222, %v218, 1326507024
    %v233 = vsel %vm221, %v215, %v232
    %v234 = vsel %vm220, %v231, %v233
    %v235 = vshll.u32 %v195, 8
    %v236 = vmul.u32.u64.compose %v235, %v234
    %v237 = vextract.low.u32 %v236
    %v238 = vextract.high.u32 %v236
    %v239 = vmul.u32.u64.compose %v235, %v230
    %v240 = vextract.low.u32 %v239
    %v241 = vextract.high.u32 %v239
    %v242 = vmul.u32 %v235, %v226
    %v243 = vadd.s32 %v238, %v240
    %vm244 = vc.u32 %v238, %v240
    %v245 = vadd.s32 %v241, 1
    %v246 = vsel %vm244, %v245, %v241
    %v247 = vadd.s32 %v242, %v246
    %v248 = vadd.s32 %v247, 536870912
    %v249 = vshrl.u32 %v248, 30
    %v250 = vshll.u32 %v249, 30
    %v251 = vsub.s32 %v247, %v250
    %vm252 = vcmp.lt.s32.totalorder %v251, 0
    %v253 = vsub.s32 0, %v251
    %v254 = vsel %vm252, %v253, %v251
    %v255 = vclz %v254
    %v256 = vsub.s32 %v255, 2
    %vm257 = vcmp.gt.s32.totalorder 0, %v256
    %v258 = vsel %vm257, 0, %v256
    %v259 = vsub.s32 32, %v258
    %v260 = vshll.u32 %v251, %v258
    %v261 = vshrl.u32 %v243, %v259
    %v262 = vor.u32 %v260, %v261
    %v263 = vsub.s32 4294967266, %v258
    %v264 = vadd.s32 %v263, 127
    %v265 = vshll.u32 %v264, 23
    %v266 = vor.u32 4788187, %v265
    %v267 = vand.u32 2147483647, %v266
    %v269 = vcvt.s32.f32 %v262
    %v270 = vmul.f32 %v269, %v267
    %v271 = vxor.u32 %v270, 2147483648
    %v272 = vsel %vm189, %v271, %v270
    %v273 = vsub.s32 4, %v249
    %v274 = vsel %vm189, %v273, %v249
    %v275 = vsel %vm188, %v80, %v272
    %v276 = vsel %vm188, 0, %v274
    %v277 = vcosq.f32.pop %v275
    %v278 = vsinq.f32.pop %v275
    %vm279 = vweird.f32 %v80
    %v280 = vand.u32 %v276, 3
    %vm281 = vcmp.lt.s32.totalorder %v280, 2
    %vm282 = vcmp.eq.s32.totalorder %v280, 0
    %v283 = vxor.u32 %v278, 2147483648
    %v284 = vsel %vm282, %v277, %v283
    %vm285 = vcmp.eq.s32.totalorder %v280, 2
    %v286 = vxor.u32 %v277, 2147483648
    %v287 = vsel %vm285, %v286, %v278
    %v288 = vsel %vm281, %v284, %v287
    %v289 = vsel %vm279, nan, %v288
    %v290 = vsel %vm82, 1, 0
    %v291 = vlaneseq
    %v292 = vshrl.u32 %v291, 7
    %v293 = vsub.s32 0, %v292
    %v294 = vrot.slane %v290, %v293
    %vm295 = vcmp.eq.s32.totalorder %v294, 1
    %v296 = vsel %vm295, %v186, %v289
    %297 = vst [vmem:[#allocation7] sm:$0x3] %v296
    // Predicated region
    $region18: #{tpu_custom_call.1} parent=1 // pred_check
      _
    $region19: #{tpu_custom_call.1} parent=1 // pred_check_branch
      %299 = sbr.rel (0) target = $region21
    $region20: #{tpu_custom_call.1} parent=1 // pred_region
      %s301 = ssub.s32 32, 32
      %302 = vsyncadd [#allocation4], %s301
      %s304 = sshll.u32 [#allocation7], 4
      %s305 = int_to_ptr.vmem [resolvable:$true] %s304
      %307 = dma.vmem_to_hbm [thread:$0]  %s305, 32, %s2, [#allocation4]
    $region21: #{tpu_custom_call.1} parent=1 // pred_fallthru
      _
    // Predicated region
    $region22: #{tpu_custom_call.1} parent=1 // pred_check
      _
    $region23: #{tpu_custom_call.1} parent=1 // pred_check_branch
      %309 = sbr.rel (0) target = $region25
    $region24: #{tpu_custom_call.1} parent=1 // pred_region
      %310 = dma.done [#allocation4], 32
    $region25: #{tpu_custom_call.1} parent=1 // pred_fallthru
      _
    %311 = vsyncpa [#allocation3], 1
    %312 = vsyncpa [#allocation6], 1
    %313 = vsyncpa [#allocation4], 1

</llo_original>
